<compile_context>
chip_gen: v5e
topology: v5e:2x2
jax: 0.10.0
libtpu: 0.0.40
codegen_flags: <defaults>
</compile_context>

<pallas_src>
import functools

import jax
import jax.numpy as jnp
from jax.experimental import pallas as pl
from jax.experimental.pallas import tpu as pltpu


def _conv_gemm_relu_kernel(patches_ref, w_ref, b_ref, o_ref, *, N, HW):
    """Fused conv-as-GEMM + bias + ReLU; whole batch in one MXU dot.

    patches_ref: (K, N*HW)     bf16 im2col patches, K = Cin*KH*KW,
                               columns ordered (n major, then h*w)
    w_ref:       (Cout, K)     bf16 conv weight as a GEMM matrix
    b_ref:       (Cout, 1)     f32 bias, broadcast along the lane axis
    o_ref:       (N, Cout, HW) f32 output; lane axis = HW (lane-dense)
    """
    # Single MXU contraction over K for the whole batch; f32 accumulation.
    acc = jnp.dot(w_ref[...], patches_ref[...],
                  preferred_element_type=jnp.float32)          # (Cout, N*HW)
    # f32 epilogue (bias + ReLU) — keep f32 even with bf16 MXU operands
    # (v5e's VPU has no bf16 ALU path); cast only at the store.
    acc = jnp.maximum(acc + b_ref[...], 0.0)
    for n in range(N):  # tiny static batch: 256-aligned lane slices, unmasked stores
        o_ref[n] = acc[:, n * HW:(n + 1) * HW].astype(o_ref.dtype)


@jax.jit
def new_model_forward(x_nchw, weight, bias):
    """Pallas forward of the truncated net: ReLU(Conv2d(x, weight, bias)).

    x_nchw: [N, Cin, H, W] float32 (PyTorch layout)
    weight: [Cout, Cin, KH, KW] float32 (PyTorch layout)
    bias:   [Cout] float32
    returns [N, Cout, H, W] float32
    """
    N, Cin, H, W = x_nchw.shape
    Cout, _, KH, KW = weight.shape
    # SAME padding for odd kernels / stride 1 only (true for the fixed 3x3 conv).
    pad_h, pad_w = (KH - 1) // 2, (KW - 1) // 2
    K, HW = Cin * KH * KW, H * W

    # --- glue (plain JAX, fused by XLA): zero-pad + im2col patch extraction.
    # Column order is (n major, then h*w) so the kernel can write per-batch
    # 256-aligned lane slices; K order is (cin, kh, kw), matching a free
    # row-major reshape of the PyTorch weight [Cout, Cin, KH, KW] -> [Cout, K].
    # TODO(synk): at large H*W, form patches in-kernel from x_pad (9 shifted
    # slices or 9 accumulating K=Cin dots) to avoid the 9x im2col HBM traffic.
    x_pad = jnp.pad(x_nchw, ((0, 0), (0, 0), (pad_h, pad_h), (pad_w, pad_w)))
    x_cnhw = jnp.transpose(x_pad, (1, 0, 2, 3))               # (Cin, N, Hp, Wp)
    taps = [x_cnhw[:, :, kh:kh + H, kw:kw + W]                # each (Cin, N, H, W)
            for kh in range(KH) for kw in range(KW)]
    patches = jnp.stack(taps, axis=1).reshape(K, N * HW)      # (36, 512)

    # bf16 MXU operands (single-pass MXU on all gens, half the DMA);
    # accumulation and epilogue remain f32.
    patches = patches.astype(jnp.bfloat16)
    w_mat = weight.reshape(Cout, K).astype(jnp.bfloat16)      # (8, 36)
    b_col = bias.reshape(Cout, 1).astype(jnp.float32)         # (8, 1)

    kernel = functools.partial(_conv_gemm_relu_kernel, N=N, HW=HW)

    out_flat = pl.pallas_call(
        kernel,
        out_shape=jax.ShapeDtypeStruct((N, Cout, HW), jnp.float32),
        grid_spec=pltpu.PrefetchScalarGridSpec(
            num_scalar_prefetch=0,
            # Single grid step: the whole problem is ~100 KB of VMEM, so any
            # split (including the v7x second TensorCore) would be pure
            # per-step overhead.  Scaling path: when N / H*W grow, switch to
            # grid=(num_tiles,) with dimension_semantics=("parallel",) and keep
            # each (K, tile) patches block <= ~8-12 MiB so the double-buffered
            # footprint fits v7x's 64 MiB VMEM (v5e/v6e can take ~2x bigger).
            grid=(1,),
            in_specs=[
                pl.BlockSpec((K, N * HW), lambda i: (0, 0)),
                pl.BlockSpec((Cout, K), lambda i: (0, 0)),
                pl.BlockSpec((Cout, 1), lambda i: (0, 0)),
            ],
            out_specs=pl.BlockSpec((N, Cout, HW), lambda i: (0, 0, 0)),
        ),
        compiler_params=pltpu.CompilerParams(
            dimension_semantics=("arbitrary",),
            vmem_limit_bytes=32 * 1024 * 1024,   # explicit headroom, v7x-safe
        ),
    )(patches, w_mat, b_col)

    # Already in NCHW-flattened order: pure reshape, no transpose.
    return out_flat.reshape(N, Cout, H, W)


def _reference_forward(x_nchw, weight, bias, operand_dtype=jnp.float32):
    """Plain-JAX reference (lax conv, f32 accumulation) for correctness checks."""
    out = jax.lax.conv_general_dilated(
        x_nchw.astype(operand_dtype), weight.astype(operand_dtype),
        window_strides=(1, 1), padding="SAME",
        dimension_numbers=("NCHW", "OIHW", "NCHW"),
        preferred_element_type=jnp.float32)
    out = out + bias.reshape(1, -1, 1, 1).astype(jnp.float32)
    return jnp.maximum(out, 0.0)


if __name__ == "__main__":
    # Small shapes consistent with the module's conv-backbone forward.
    N, Cin, H, W = 2, 4, 16, 16
    Cout, KH, KW = 8, 3, 3

    key = jax.random.PRNGKey(0)
    kx, kw, kb = jax.random.split(key, 3)
    x = jax.random.normal(kx, (N, Cin, H, W), dtype=jnp.float32)
    # Deterministic synthetic "pretrained" conv1 parameters.
    weight = jax.random.normal(kw, (Cout, Cin, KH, KW), dtype=jnp.float32) * 0.1
    bias = jax.random.normal(kb, (Cout,), dtype=jnp.float32) * 0.1

    out = jax.block_until_ready(new_model_forward(x, weight, bias))
    assert out.shape == (N, Cout, H, W)

    # Tight check against a reference using the same bf16 operands / f32 accum.
    ref_bf16 = jax.block_until_ready(
        _reference_forward(x, weight, bias, operand_dtype=jnp.bfloat16))
    assert jnp.allclose(out, ref_bf16, atol=1e-4, rtol=1e-4)

    # Loose sanity check against the full-f32 reference (bf16 operand rounding).
    ref_f32 = jax.block_until_ready(_reference_forward(x, weight, bias))
    assert jnp.allclose(out, ref_f32, atol=2e-2, rtol=2e-2)

    print("KERNEL_OK")
</pallas_src>

<mosaic_0001>
module attributes {stable_mosaic.version = 11 : i64} {
  func.func @_conv_gemm_relu_kernel(%arg0: i32, %arg1: memref<36x512xbf16, #tpu.memory_space<vmem>>, %arg2: memref<8x36xbf16, #tpu.memory_space<vmem>>, %arg3: memref<8x1xf32, #tpu.memory_space<vmem>>, %arg4: memref<2x8x256xf32, #tpu.memory_space<vmem>>) attributes {dimension_semantics = [#tpu.dimension_semantics<arbitrary>], iteration_bounds = array<i64: 1>, scalar_prefetch = 0 : i64, scratch_operands = 0 : i64, tpu.core_type = #tpu.core_type<tc>, window_params = [{pipeline_mode = #tpu.pipeline_mode<synchronous>, transform_indices = @transform_0, window_bounds = array<i64: 36, 512>}, {pipeline_mode = #tpu.pipeline_mode<synchronous>, transform_indices = @transform_1, window_bounds = array<i64: 8, 36>}, {pipeline_mode = #tpu.pipeline_mode<synchronous>, transform_indices = @transform_2, window_bounds = array<i64: 8, 1>}, {pipeline_mode = #tpu.pipeline_mode<synchronous>, transform_indices = @transform_3, window_bounds = array<i64: 2, 8, 256>}]} {
    %c0 = arith.constant 0 : index
    %c0_0 = arith.constant 0 : index
    %0 = vector.load %arg2[%c0, %c0_0] : memref<8x36xbf16, #tpu.memory_space<vmem>>, vector<8x36xbf16>
    %c0_1 = arith.constant 0 : index
    %c0_2 = arith.constant 0 : index
    %1 = vector.load %arg1[%c0_1, %c0_2] : memref<36x512xbf16, #tpu.memory_space<vmem>>, vector<36x512xbf16>
    %cst = arith.constant dense<0.000000e+00> : vector<8x512xf32>
    %2 = tpu.matmul %0, %1, %cst {dimension_numbers = #tpu.dot_dimension_numbers<[1], [0], [0], [1], [0, 0, 1, 1], [], []>} : vector<8x36xbf16>, vector<36x512xbf16>, vector<8x512xf32> -> vector<8x512xf32>
    %c0_3 = arith.constant 0 : index
    %c0_4 = arith.constant 0 : index
    %3 = vector.load %arg3[%c0_3, %c0_4] : memref<8x1xf32, #tpu.memory_space<vmem>>, vector<8x1xf32>
    %4 = vector.broadcast %3 : vector<8x1xf32> to vector<8x512xf32>
    %5 = arith.addf %2, %4 : vector<8x512xf32>
    %cst_5 = arith.constant 0.000000e+00 : f32
    %6 = vector.broadcast %cst_5 : f32 to vector<8x512xf32>
    %7 = arith.maximumf %5, %6 : vector<8x512xf32>
    %8 = vector.extract_strided_slice %7 {offsets = [0, 0], sizes = [8, 256], strides = [1, 1]} : vector<8x512xf32> to vector<8x256xf32>
    %c0_6 = arith.constant 0 : index
    %c0_7 = arith.constant 0 : index
    %c0_8 = arith.constant 0 : index
    %9 = vector.load %arg4[%c0_6, %c0_7, %c0_8] : memref<2x8x256xf32, #tpu.memory_space<vmem>>, vector<1x8x256xf32>
    %10 = vector.shape_cast %9 : vector<1x8x256xf32> to vector<8x256xf32>
    %11 = vector.shape_cast %8 : vector<8x256xf32> to vector<1x8x256xf32>
    tpu.vector_store %arg4[%c0_6, %c0_7, %c0_8], %11 {strides = array<i32>} : memref<2x8x256xf32, #tpu.memory_space<vmem>>, vector<1x8x256xf32>,
    %12 = vector.extract_strided_slice %7 {offsets = [0, 256], sizes = [8, 256], strides = [1, 1]} : vector<8x512xf32> to vector<8x256xf32>
    %c1 = arith.constant 1 : index
    %c0_9 = arith.constant 0 : index
    %c0_10 = arith.constant 0 : index
    %13 = vector.load %arg4[%c1, %c0_9, %c0_10] : memref<2x8x256xf32, #tpu.memory_space<vmem>>, vector<1x8x256xf32>
    %14 = vector.shape_cast %13 : vector<1x8x256xf32> to vector<8x256xf32>
    %15 = vector.shape_cast %12 : vector<8x256xf32> to vector<1x8x256xf32>
    tpu.vector_store %arg4[%c1, %c0_9, %c0_10], %15 {strides = array<i32>} : memref<2x8x256xf32, #tpu.memory_space<vmem>>, vector<1x8x256xf32>,
    return
  }
  func.func @transform_0(%arg0: i32) -> (i32, i32) {
    %c0_i32 = arith.constant 0 : i32
    %c0_i32_0 = arith.constant 0 : i32
    %c0_i32_1 = arith.constant 0 : i32
    return %c0_i32, %c0_i32_0 : i32, i32
  }
  func.func @transform_1(%arg0: i32) -> (i32, i32) {
    %c0_i32 = arith.constant 0 : i32
    %c0_i32_0 = arith.constant 0 : i32
    %c0_i32_1 = arith.constant 0 : i32
    return %c0_i32, %c0_i32_0 : i32, i32
  }
  func.func @transform_2(%arg0: i32) -> (i32, i32) {
    %c0_i32 = arith.constant 0 : i32
    %c0_i32_0 = arith.constant 0 : i32
    %c0_i32_1 = arith.constant 0 : i32
    return %c0_i32, %c0_i32_0 : i32, i32
  }
  func.func @transform_3(%arg0: i32) -> (i32, i32, i32) {
    %c0_i32 = arith.constant 0 : i32
    %c0_i32_0 = arith.constant 0 : i32
    %c0_i32_1 = arith.constant 0 : i32
    %c0_i32_2 = arith.constant 0 : i32
    return %c0_i32, %c0_i32_0, %c0_i32_1 : i32, i32, i32
  }
}

</mosaic_0001>

<llo_original>
// kernel: new_model_forward.1
$region0: #{new_model_forward.1}
  #allocation0 [shape = 'u32[]', space=smem, size = 0x4, offset = 0x4, fixed_abs, tag = 'smem constant byte address 0x4 - core index']
  #allocation1 [shape = 'u32[72,128]{1,0:T(1,128)}', space=vmem, size = 0x9000, scoped, tag = 'internal scratch']
  %s0 = inlined_call_operand.vmem [shape: bf16[36,512], index: 0, kind: input, shape index: {}]
  %s1 = inlined_call_operand.vmem [shape: bf16[8,36], index: 1, kind: input, shape index: {}]
  %s2 = inlined_call_operand.vmem [shape: f32[8,1], index: 2, kind: input, shape index: {}]
  %s3 = inlined_call_operand.vmem [shape: f32[2,8,256], index: 3, kind: output, shape index: {}]
  %s4 = sld [smem:[#allocation0]]
  $region22: #{new_model_forward.1} parent=0
    _
  %s6 = ssub.s32 1, %s4
  %s7 = scalar_select 0, %s6, %s4
  // Predicated region
  $region2: #{new_model_forward.1} parent=0 // pred_check
    _
  $region3: #{new_model_forward.1} parent=0 // pred_check_branch
    %9 = sbr.rel (0) target = $region5
  $region4: #{new_model_forward.1} parent=0 // pred_region
    _
  $region5: #{new_model_forward.1} parent=0 // pred_fallthru
    _
  // Predicated region
  $region6: #{new_model_forward.1} parent=0 // pred_check
    _
  $region7: #{new_model_forward.1} parent=0 // pred_check_branch
    %11 = sbr.rel (0) target = $region9
  $region8: #{new_model_forward.1} parent=0 // pred_region
    _
  $region9: #{new_model_forward.1} parent=0 // pred_fallthru
    _
  // Predicated region
  $region10: #{new_model_forward.1} parent=0 // pred_check
    _
  $region11: #{new_model_forward.1} parent=0 // pred_check_branch
    %13 = sbr.rel (0) target = $region13
  $region12: #{new_model_forward.1} parent=0 // pred_region
    _
  $region13: #{new_model_forward.1} parent=0 // pred_fallthru
    _
  %v15 = vld [vmem:[%s1] sm:$0xf]
  %v16 = vld [vmem:[%s0] sm:$0xff]
  %v17 = vld [vmem:[%s0 + $0x8] sm:$0xff]
  %v18 = vld [vmem:[%s0 + $0x10] sm:$0xff]
  %v19 = vld [vmem:[%s0 + $0x18] sm:$0xff]
  %v20 = vld [vmem:[%s0 + $0x20] sm:$0xff]
  %v21 = vld [vmem:[%s0 + $0x28] sm:$0xff]
  %v22 = vld [vmem:[%s0 + $0x30] sm:$0xff]
  %v23 = vld [vmem:[%s0 + $0x38] sm:$0xff]
  %v24 = vld [vmem:[%s0 + $0x40] sm:$0x33]
  %v25 = vld [vmem:[%s0 + $0x48] sm:$0x33]
  %v26 = vld [vmem:[%s2] sm:$0xff]
  %28 = vset.pattern.permute.xlu0 0
  %29 = vperm.xlu0 %28, %v26
  %v30 = vpop.permute.xlu0 %29
  %v42 = vunpack.c.l.b16 %v16
  %v43 = vunpack.c.h.b16 %v16
  %v44 = vunpack.c.l.b16 %v17
  %v45 = vunpack.c.h.b16 %v17
  %v46 = vunpack.c.l.b16 %v18
  %v47 = vunpack.c.h.b16 %v18
  %v48 = vunpack.c.l.b16 %v19
  %v49 = vunpack.c.h.b16 %v19
  %v50 = vunpack.c.l.b16 %v20
  %v51 = vunpack.c.h.b16 %v20
  %v52 = vunpack.c.l.b16 %v21
  %v53 = vunpack.c.h.b16 %v21
  %v54 = vunpack.c.l.b16 %v22
  %v55 = vunpack.c.h.b16 %v22
  %v56 = vunpack.c.l.b16 %v23
  %v57 = vunpack.c.h.b16 %v23
  %v58 = vunpack.c.l.b16 %v24
  %v59 = vunpack.c.h.b16 %v24
  %v60 = vunpack.c.l.b16 %v25
  %v61 = vunpack.c.h.b16 %v25
  %v62 = vpack.c.b16 %v46, %v42
  %v63 = vpack.c.b16 %v47, %v43
  %v64 = vpack.c.b16 %v48, %v44
  %v65 = vpack.c.b16 %v49, %v45
  %v66 = vpack.c.b16 %v54, %v50
  %v67 = vpack.c.b16 %v55, %v51
  %v68 = vpack.c.b16 %v56, %v52
  %v69 = vpack.c.b16 %v57, %v53
  %v70 = vpack.c.b16 %v58, %v58
  %v71 = vpack.c.b16 %v59, %v59
  %v72 = vpack.c.b16 %v60, %v60
  %v73 = vpack.c.b16 %v61, %v61
  %vm82 = vcmask 293888
  %v84 = vsel %vm82, %v15, 0
  %vm86 = vcmask 1041408
  %v88 = vsel %vm86, %v70, 0
  %v91 = vsel %vm86, %v71, 0
  %v94 = vsel %vm86, %v72, 0
  %v97 = vsel %vm86, %v73, 0
  %99 = vmatpush.bf16.msra.mxu0 0
  %100 = vmatpush.bf16.msra.mxu0 0
  %101 = vmatpush.bf16.msra.mxu0 0
  %102 = vmatpush.bf16.msra.mxu0 0
  %103 = vmatpush.bf16.msra.mxu0 0
  %104 = vmatpush.bf16.msra.mxu0 %v88
  %105 = vmatpush.bf16.msra.mxu0 %v66
  %106 = vmatpush.bf16.msra.mxu0 %v62
  %107 = vmatmul.bf16.gmra.mxu0 %v84
  %v108 = vpop.f32.mrf.mxu0
  %v109 = vadd.f32 %v30, %v108
  %v110 = vpop.f32.mrf.mxu0
  %111 = vdwg.mxu0
  %112 = vmatpush.bf16.msra.mxu0 0
  %113 = vmatpush.bf16.msra.mxu0 0
  %114 = vmatpush.bf16.msra.mxu0 0
  %115 = vmatpush.bf16.msra.mxu0 0
  %116 = vmatpush.bf16.msra.mxu0 0
  %117 = vmatpush.bf16.msra.mxu0 %v91
  %118 = vmatpush.bf16.msra.mxu0 %v67
  %119 = vmatpush.bf16.msra.mxu0 %v63
  %120 = vmatmul.bf16.gmra.mxu0 %v84
  %v121 = vpop.f32.mrf.mxu0
  %v122 = vadd.f32 %v30, %v121
  %v123 = vpop.f32.mrf.mxu0
  %124 = vdwg.mxu0
  %125 = vmatpush.bf16.msra.mxu0 0
  %126 = vmatpush.bf16.msra.mxu0 0
  %127 = vmatpush.bf16.msra.mxu0 0
  %128 = vmatpush.bf16.msra.mxu0 0
  %129 = vmatpush.bf16.msra.mxu0 0
  %130 = vmatpush.bf16.msra.mxu0 %v94
  %131 = vmatpush.bf16.msra.mxu0 %v68
  %132 = vmatpush.bf16.msra.mxu0 %v64
  %133 = vmatmul.bf16.gmra.mxu0 %v84
  %v134 = vpop.f32.mrf.mxu0
  %v135 = vadd.f32 %v30, %v134
  %v136 = vpop.f32.mrf.mxu0
  %137 = vdwg.mxu0
  %138 = vmatpush.bf16.msra.mxu0 0
  %139 = vmatpush.bf16.msra.mxu0 0
  %140 = vmatpush.bf16.msra.mxu0 0
  %141 = vmatpush.bf16.msra.mxu0 0
  %142 = vmatpush.bf16.msra.mxu0 0
  %143 = vmatpush.bf16.msra.mxu0 %v97
  %144 = vmatpush.bf16.msra.mxu0 %v69
  %145 = vmatpush.bf16.msra.mxu0 %v65
  %146 = vmatmul.bf16.gmra.mxu0 %v84
  %v147 = vpop.f32.mrf.mxu0
  %v148 = vadd.f32 %v30, %v147
  %v149 = vpop.f32.mrf.mxu0
  %150 = vdwg.mxu0
  %v151 = vmax.f32 %v109, 0.0
  %v152 = vmax.f32 %v122, 0.0
  %v153 = vmax.f32 %v135, 0.0
  %v154 = vmax.f32 %v148, 0.0
  %155 = vst [vmem:[%s3] sm:$0xff] %v151
  %156 = vst [vmem:[%s3 + $0x8] sm:$0xff] %v152
  %s157 = scalar_lea.vmem %s3, 16
  %158 = vst [vmem:[%s157] sm:$0xff] %v153
  %159 = vst [vmem:[%s157 + $0x8] sm:$0xff] %v154
  // Predicated region
  $region14: #{new_model_forward.1} parent=0 // pred_check
    _
  $region15: #{new_model_forward.1} parent=0 // pred_check_branch
    %161 = sbr.rel (0) target = $region17
  $region16: #{new_model_forward.1} parent=0 // pred_region
    _
  $region17: #{new_model_forward.1} parent=0 // pred_fallthru
    _
  // Predicated region
  $region18: #{new_model_forward.1} parent=0 // pred_check
    _
  $region19: #{new_model_forward.1} parent=0 // pred_check_branch
    %163 = sbr.rel (0) target = $region21
  $region20: #{new_model_forward.1} parent=0 // pred_region
    _
  $region21: #{new_model_forward.1} parent=0 // pred_fallthru
    _

</llo_original>
